<compile_context>
chip_gen: v5e
topology: v5e:2x2
jax: 0.10.0
libtpu: 0.0.40
codegen_flags: <defaults>
</compile_context>

<pallas_src>
import math
from functools import partial

import numpy as np
import jax
import jax.numpy as jnp
from jax.experimental import pallas as pl
from jax.experimental.pallas import tpu as pltpu


ACT_DT = jnp.bfloat16                      # activation dtype carried in HBM
VMEM_LIMIT = 32 * 1024 * 1024
_CP = pltpu.CompilerParams(dimension_semantics=("parallel",),
                           vmem_limit_bytes=VMEM_LIMIT)


# ----------------------------------------------------------------------------
# small helpers
# ----------------------------------------------------------------------------
def _pick_tm(M):
    for t in (2048, 1024, 512, 256, 128, 64, 32, 16):
        if M % t == 0:
            return t
    return M                      # full-extent block (legal for any size)


def _pick_bc(Bt, M, N):
    for c in (64, 32, 16, 8, 4, 3, 2):
        if Bt % c == 0 and c * M * N * 4 <= (8 << 20):
            return c
    return 1


def _gelu_tanh(y):
    c = 0.7978845608028654
    return 0.5 * y * (1.0 + jnp.tanh(c * (y + 0.044715 * y * y * y)))


def _sigmoid(y):
    return 1.0 / (1.0 + jnp.exp(-y))


def _act_apply(y, act, aux):
    if act == 'relu':
        return jnp.maximum(y, 0.0)
    if act == 'lrelu':
        return jnp.where(y >= 0.0, y, 0.2 * y)
    if act == 'prelu':
        return jnp.where(y >= 0.0, y, y * aux)
    if act == 'gelu':
        return _gelu_tanh(y)
    if act == 'sigmoid':
        return _sigmoid(y)
    if act == 'softthr':
        sign = jnp.where(y > 0.0, 1.0, jnp.where(y < 0.0, -1.0, 0.0))
        return sign * jnp.maximum(jnp.abs(y) - aux, 0.0)
    return y


# ----------------------------------------------------------------------------
# Pallas kernel: (optional LayerNorm) -> matmul -> bias/act/residual epilogue
# ----------------------------------------------------------------------------
def _make_mm_kernel(act, act_after_res, has_ln, has_bias, has_aux, has_res):
    def kern(*refs):
        it = iter(refs)
        a_ref = next(it)
        w_ref = next(it)
        g_ref = next(it) if has_ln else None
        bln_ref = next(it) if has_ln else None
        bias_ref = next(it) if has_bias else None
        aux_ref = next(it) if has_aux else None
        res_ref = next(it) if has_res else None
        o_ref = next(it)

        x = a_ref[...]
        if has_ln:
            x32 = x.astype(jnp.float32)
            mu = jnp.mean(x32, axis=-1, keepdims=True)
            var = jnp.mean((x32 - mu) ** 2, axis=-1, keepdims=True)
            x32 = (x32 - mu) * jax.lax.rsqrt(var + 1e-5) * g_ref[...] + bln_ref[...]
            xb = x32.astype(jnp.bfloat16)
        else:
            xb = x.astype(jnp.bfloat16)
        y = jnp.dot(xb, w_ref[...], preferred_element_type=jnp.float32)
        if has_bias:
            y = y + bias_ref[...]
        aux = aux_ref[...] if has_aux else None
        if not act_after_res:
            y = _act_apply(y, act, aux)
        if has_res:
            y = y + res_ref[...].astype(jnp.float32)
        if act_after_res:
            y = _act_apply(y, act, aux)
        o_ref[...] = y.astype(o_ref.dtype)
    return kern


@partial(jax.jit, static_argnames=('act', 'act_after_res'))
def _matmul_fused_jit(a, w, bias, g, bln, aux, res, *, act, act_after_res):
    M, K = a.shape
    N = w.shape[1]
    tm = _pick_tm(M)
    has_ln = g is not None
    has_bias = bias is not None
    has_aux = aux is not None
    has_res = res is not None

    in_specs = [pl.BlockSpec((tm, K), lambda i: (i, 0)),
                pl.BlockSpec((K, N), lambda i: (0, 0))]
    args = [a, w]
    if has_ln:
        in_specs += [pl.BlockSpec((1, K), lambda i: (0, 0)),
                     pl.BlockSpec((1, K), lambda i: (0, 0))]
        args += [g.reshape(1, K), bln.reshape(1, K)]
    if has_bias:
        in_specs.append(pl.BlockSpec((1, N), lambda i: (0, 0)))
        args.append(bias.reshape(1, N))
    if has_aux:
        aux2 = aux.reshape(1, -1)
        in_specs.append(pl.BlockSpec((1, aux2.shape[1]), lambda i: (0, 0)))
        args.append(aux2)
    if has_res:
        in_specs.append(pl.BlockSpec((tm, N), lambda i: (i, 0)))
        args.append(res)

    return pl.pallas_call(
        _make_mm_kernel(act, act_after_res, has_ln, has_bias, has_aux, has_res),
        out_shape=jax.ShapeDtypeStruct((M, N), ACT_DT),
        grid=(M // tm,),
        in_specs=in_specs,
        out_specs=pl.BlockSpec((tm, N), lambda i: (i, 0)),
        compiler_params=_CP,
    )(*args)


def matmul_fused(a, w, bias=None, act='none', aux=None, res=None, ln=None,
                 act_after_res=False):
    g, bln = ln if ln is not None else (None, None)
    a = a.astype(ACT_DT)
    res = res.astype(ACT_DT) if res is not None else None
    return _matmul_fused_jit(a, w, bias, g, bln, aux, res,
                             act=act, act_after_res=act_after_res)


# ----------------------------------------------------------------------------
# Pallas kernel: fused 3x3 conv (in-kernel halo, K=3C matmuls) + epilogue
# ----------------------------------------------------------------------------
def _make_conv3x3_kernel(act, act_after_res, has_bias, has_aux, has_hin,
                         has_scale, has_res, half, H, W):
    def kern(*refs):
        it = iter(refs)
        x_ref = next(it)
        w_ref = next(it)
        bias_ref = next(it) if has_bias else None
        aux_ref = next(it) if has_aux else None
        hg_ref = next(it) if has_hin else None
        hb_ref = next(it) if has_hin else None
        scale_ref = next(it) if has_scale else None
        res_ref = next(it) if has_res else None
        o_ref = next(it)
        pad_ref = next(it)

        C = x_ref.shape[-1]
        O = o_ref.shape[-1]
        # 1-pixel halo built in VMEM (no XLA pad / extra HBM read).
        pad_ref[...] = jnp.zeros_like(pad_ref)
        pad_ref[pl.ds(1, H), pl.ds(1, W), :] = x_ref[0].astype(jnp.bfloat16)
        xp = pad_ref[...]

        acc = jnp.zeros((H * W, O), jnp.float32)
        for ky in range(3):
            row = xp[ky:ky + H]                               # (H, W+2, C)
            patch = jnp.concatenate(
                [row[:, 0:W, :], row[:, 1:W + 1, :], row[:, 2:W + 2, :]],
                axis=-1).reshape(H * W, 3 * C)                # K = 3C
            acc = acc + jnp.dot(patch, w_ref[ky],
                                preferred_element_type=jnp.float32)
        if has_bias:
            acc = acc + bias_ref[...]
        if has_hin:                                           # half-instance-norm
            mu = jnp.mean(acc, axis=0, keepdims=True)
            var = jnp.mean((acc - mu) ** 2, axis=0, keepdims=True)
            accn = (acc - mu) * jax.lax.rsqrt(var + 1e-5) * hg_ref[...] + hb_ref[...]
            cidx = jax.lax.broadcasted_iota(jnp.int32, acc.shape, 1)
            acc = jnp.where(cidx < half, accn, acc)
        aux = aux_ref[...] if has_aux else None
        if not act_after_res:
            acc = _act_apply(acc, act, aux)
        if has_scale:
            acc = acc * scale_ref[...]
        if has_res:
            acc = acc + res_ref[0].reshape(H * W, -1).astype(jnp.float32)
        if act_after_res:
            acc = _act_apply(acc, act, aux)
        o_ref[...] = acc.reshape(1, H, W, O).astype(o_ref.dtype)
    return kern


@partial(jax.jit,
         static_argnames=('act', 'act_after_res', 'half', 'o_true'))
def _conv3x3_jit(x, w3, bias, aux, hg, hb, scale, res, *, act, act_after_res,
                 half, o_true):
    B, H, W, C = x.shape
    Oc = w3.shape[2]
    has_bias = bias is not None
    has_aux = aux is not None
    has_hin = hg is not None
    has_scale = scale is not None
    has_res = res is not None

    in_specs = [pl.BlockSpec((1, H, W, C), lambda b: (b, 0, 0, 0)),
                pl.BlockSpec((3, 3 * C, Oc), lambda b: (0, 0, 0))]
    args = [x, w3]
    if has_bias:
        in_specs.append(pl.BlockSpec((1, Oc), lambda b: (0, 0)))
        args.append(bias.reshape(1, Oc))
    if has_aux:
        a2 = aux.reshape(1, -1)
        in_specs.append(pl.BlockSpec((1, a2.shape[1]), lambda b: (0, 0)))
        args.append(a2)
    if has_hin:
        in_specs += [pl.BlockSpec((1, Oc), lambda b: (0, 0)),
                     pl.BlockSpec((1, Oc), lambda b: (0, 0))]
        args += [hg.reshape(1, Oc), hb.reshape(1, Oc)]
    if has_scale:
        in_specs.append(pl.BlockSpec((1, Oc), lambda b: (0, 0)))
        args.append(scale.reshape(1, Oc))
    if has_res:
        Cr = res.shape[-1]
        in_specs.append(pl.BlockSpec((1, H, W, Cr), lambda b: (b, 0, 0, 0)))
        args.append(res)

    out = pl.pallas_call(
        _make_conv3x3_kernel(act, act_after_res, has_bias, has_aux, has_hin,
                             has_scale, has_res, half, H, W),
        out_shape=jax.ShapeDtypeStruct((B, H, W, Oc), ACT_DT),
        grid=(B,),
        in_specs=in_specs,
        out_specs=pl.BlockSpec((1, H, W, Oc), lambda b: (b, 0, 0, 0)),
        scratch_shapes=[pltpu.VMEM((H + 2, W + 2, C), jnp.bfloat16)],
        compiler_params=_CP,
    )(*args)
    if o_true != Oc:
        out = out[..., :o_true]
    return out


def conv3x3(x, p, act='none', aux=None, res=None, scale=None, hin=None,
            act_after_res=False):
    hg, hb, half = hin if hin is not None else (None, None, None)
    x = x.astype(ACT_DT)
    res = res.astype(ACT_DT) if res is not None else None
    return _conv3x3_jit(x, p['w3'], p['b'], aux, hg, hb, scale, res,
                        act=act, act_after_res=act_after_res, half=half,
                        o_true=p['o'])


def conv1x1(x, p, act='none', res=None, ln=None, act_after_res=False):
    B, H, W, C = x.shape
    res_rows = res.reshape(B * H * W, -1) if res is not None else None
    y = matmul_fused(x.reshape(B * H * W, C), p['w'], p['b'], act=act,
                     res=res_rows, ln=ln, act_after_res=act_after_res)
    return y.reshape(B, H, W, -1)


# ----------------------------------------------------------------------------
# Pallas kernel: depthwise 3x3 (in-kernel halo, optional fused GDFN gate)
# ----------------------------------------------------------------------------
def _make_dw_kernel(has_bias, gate, H, W):
    def kern(*refs):
        it = iter(refs)
        x_ref = next(it)
        w_ref = next(it)
        bias_ref = next(it) if has_bias else None
        o_ref = next(it)
        pad_ref = next(it)

        C = x_ref.shape[-1]
        pad_ref[...] = jnp.zeros_like(pad_ref)
        pad_ref[pl.ds(1, H), pl.ds(1, W), :] = x_ref[0]
        xp = pad_ref[...].astype(jnp.float32)           # cast hoisted (once)

        acc = jnp.zeros((H, W, C), jnp.float32)
        for ky in range(3):
            for kx in range(3):
                acc = acc + xp[ky:ky + H, kx:kx + W, :] * w_ref[ky * 3 + kx]
        if has_bias:
            acc = acc + bias_ref[...]
        if gate:                                         # GDFN: gelu(z1) * z2
            h = C // 2
            acc = _gelu_tanh(acc[..., :h]) * acc[..., h:]
        o_ref[0] = acc.astype(o_ref.dtype)
    return kern


@partial(jax.jit, static_argnames=('gate',))
def _dwconv3x3_jit(x, w9, bias, *, gate):
    B, H, W, C = x.shape
    Cout = C // 2 if gate else C
    has_bias = bias is not None
    in_specs = [pl.BlockSpec((1, H, W, C), lambda b: (b, 0, 0, 0)),
                pl.BlockSpec((9, 1, C), lambda b: (0, 0, 0))]
    args = [x, w9]
    if has_bias:
        in_specs.append(pl.BlockSpec((1, C), lambda b: (0, 0)))
        args.append(bias.reshape(1, C))
    return pl.pallas_call(
        _make_dw_kernel(has_bias, gate, H, W),
        out_shape=jax.ShapeDtypeStruct((B, H, W, Cout), ACT_DT),
        grid=(B,),
        in_specs=in_specs,
        out_specs=pl.BlockSpec((1, H, W, Cout), lambda b: (b, 0, 0, 0)),
        scratch_shapes=[pltpu.VMEM((H + 2, W + 2, C), ACT_DT)],
        compiler_params=_CP,
    )(*args)


def dwconv3x3(x, p, gate=False):
    return _dwconv3x3_jit(x.astype(ACT_DT), p['w9'], p['b'], gate=gate)


# ----------------------------------------------------------------------------
# Pallas kernel: fused attention (scores -> +bias -> softmax -> value product)
# ----------------------------------------------------------------------------
def _make_attn_kernel(has_bias):
    def kern(*refs):
        it = iter(refs)
        q_ref = next(it)
        k_ref = next(it)
        v_ref = next(it)
        b_ref = next(it) if has_bias else None
        o_ref = next(it)

        q = q_ref[...].astype(jnp.bfloat16)
        k = k_ref[...].astype(jnp.bfloat16)
        s = jnp.einsum('bmk,bnk->bmn', q, k,
                       preferred_element_type=jnp.float32)
        if has_bias:
            s = s + b_ref[...].astype(jnp.float32)
        m = jnp.max(s, axis=-1, keepdims=True)
        p = jnp.exp(s - m)
        denom = jnp.sum(p, axis=-1, keepdims=True)
        p = p * pl.reciprocal(denom, approx=True)
        o = jnp.einsum('bmn,bnd->bmd', p.astype(jnp.bfloat16),
                       v_ref[...].astype(jnp.bfloat16),
                       preferred_element_type=jnp.float32)
        o_ref[...] = o.astype(o_ref.dtype)
    return kern


@jax.jit
def _attn_jit(q, k, v, bias):
    Bt, M, K = q.shape
    N = k.shape[1]
    Dv = v.shape[2]
    Bc = _pick_bc(Bt, M, N)
    has_bias = bias is not None

    in_specs = [pl.BlockSpec((Bc, M, K), lambda i: (i, 0, 0)),
                pl.BlockSpec((Bc, N, K), lambda i: (i, 0, 0)),
                pl.BlockSpec((Bc, N, Dv), lambda i: (i, 0, 0))]
    args = [q, k, v]
    if has_bias:
        in_specs.append(pl.BlockSpec((Bc, M, N), lambda i: (i, 0, 0)))
        args.append(bias)

    return pl.pallas_call(
        _make_attn_kernel(has_bias),
        out_shape=jax.ShapeDtypeStruct((Bt, M, Dv), ACT_DT),
        grid=(Bt // Bc,),
        in_specs=in_specs,
        out_specs=pl.BlockSpec((Bc, M, Dv), lambda i: (i, 0, 0)),
        compiler_params=_CP,
    )(*args)


def attention_fused(q, k, v, bias=None):
    return _attn_jit(q.astype(ACT_DT), k.astype(ACT_DT), v.astype(ACT_DT),
                     bias)


# ----------------------------------------------------------------------------
# Layout helpers (NHWC)
# ----------------------------------------------------------------------------
def pixel_shuffle(x, r):
    if r == 1:
        return x
    B, H, W, Crr = x.shape
    C = Crr // (r * r)
    x = x.reshape(B, H, W, C, r, r)
    x = jnp.transpose(x, (0, 1, 4, 2, 5, 3))
    return x.reshape(B, H * r, W * r, C)


def pixel_unshuffle(x, r):
    if r == 1:
        return x
    B, Hr, Wr, C = x.shape
    H, W = Hr // r, Wr // r
    x = x.reshape(B, H, r, W, r, C)
    x = jnp.transpose(x, (0, 1, 3, 5, 2, 4))
    return x.reshape(B, H, W, C * r * r)


def window_partition(x, ws):
    B, H, W, C = x.shape
    x = x.reshape(B, H // ws, ws, W // ws, ws, C)
    return jnp.transpose(x, (0, 1, 3, 2, 4, 5)).reshape(-1, ws, ws, C)


def window_reverse(wins, ws, H, W):
    C = wins.shape[-1]
    B = wins.shape[0] // ((H // ws) * (W // ws))
    x = wins.reshape(B, H // ws, W // ws, ws, ws, C)
    return jnp.transpose(x, (0, 1, 3, 2, 4, 5)).reshape(B, H, W, C)


# --- Phi (sampling) operators: stride == kernel == patch -> exact patching ---
def phi_forward_img(ximg, phi_fw):
    """F.conv2d(x, Phi, stride=P) for single-channel images (BN, H, W)."""
    BN, H, W = ximg.shape
    PP, _ = phi_fw.shape
    P = int(round(math.sqrt(PP)))
    h, w = H // P, W // P
    pat = ximg.reshape(BN, h, P, w, P)
    pat = jnp.transpose(pat, (0, 1, 3, 2, 4)).reshape(BN * h * w, P * P)
    y = matmul_fused(pat, phi_fw)
    return y, (BN, h, w, P)


def phi_transpose_rows(y, meta, phi_bw):
    """F.conv_transpose2d(y, Phi, stride=P) -> (BN, H, W) images."""
    BN, h, w, P = meta
    pat = matmul_fused(y, phi_bw)
    pat = pat.reshape(BN, h, w, P, P)
    pat = jnp.transpose(pat, (0, 1, 3, 2, 4)).reshape(BN, h * P, w * P)
    return pat


def phitphi_img(ximg, phi_fw, phi_bw):
    y, meta = phi_forward_img(ximg, phi_fw)
    return phi_transpose_rows(y, meta, phi_bw)


# ----------------------------------------------------------------------------
# Parameter builders (deterministic, synthetic; weights in kernel layout)
# ----------------------------------------------------------------------------
class Rng:
    def __init__(self, key):
        self.key = key

    def normal(self, shape, std=0.02):
        self.key, k = jax.random.split(self.key)
        return std * jax.random.normal(k, shape, jnp.float32)


def make_ln(dim):
    return {'w': jnp.ones((dim,), jnp.float32),
            'b': jnp.zeros((dim,), jnp.float32)}


def make_conv3(rng, o, i, bias=True):
    oc = ((o + 7) // 8) * 8
    w = rng.normal((o, i, 3, 3))
    w3 = jnp.transpose(w, (2, 3, 1, 0)).reshape(3, 3 * i, o)   # (ky, kx*C, O)
    if oc != o:
        w3 = jnp.pad(w3, ((0, 0), (0, 0), (0, oc - o)))
    return {'w3': w3.astype(jnp.bfloat16),
            'b': jnp.zeros((oc,), jnp.float32) if bias else None,
            'o': o}


def make_conv1(rng, o, i, bias=True):
    w = rng.normal((o, i))
    return {'w': jnp.transpose(w).astype(jnp.bfloat16),
            'b': jnp.zeros((o,), jnp.float32) if bias else None}


def make_dw(rng, c, bias=False):
    w = rng.normal((c, 3, 3))
    w9 = jnp.transpose(w, (1, 2, 0)).reshape(9, 1, c).astype(jnp.float32)
    return {'w9': w9, 'b': jnp.zeros((c,), jnp.float32) if bias else None}


# --- Restormer TransformerBlock --------------------------------------------
def make_tblock(rng, dim, heads, ffn_factor=2.66, bias=False):
    hidden = int(dim * ffn_factor)
    return {'heads': heads, 'hidden': hidden,
            'n1': make_ln(dim), 'n2': make_ln(dim),
            'temp': jnp.ones((heads,), jnp.float32),
            'qkv': make_conv1(rng, dim * 3, dim, bias),
            'qkv_dw': make_dw(rng, dim * 3, bias),
            'proj': make_conv1(rng, dim, dim, bias),
            'pin': make_conv1(rng, hidden * 2, dim, bias),
            'ffn_dw': make_dw(rng, hidden * 2, bias),
            'pout': make_conv1(rng, dim, hidden, bias)}


def tblock_forward(x, p, final_act='none'):
    B, H, W, C = x.shape
    heads = p['heads']
    d = C // heads
    # --- MDTA attention (LayerNorm fused into the qkv 1x1 conv) ---
    qkv = conv1x1(x, p['qkv'], ln=(p['n1']['w'], p['n1']['b']))
    qkv = dwconv3x3(qkv, p['qkv_dw'])
    q = qkv[..., :C]
    k = qkv[..., C:2 * C]
    v = qkv[..., 2 * C:]

    def to_heads(t):
        t = t.reshape(B, H * W, heads, d)
        return jnp.transpose(t, (0, 2, 3, 1)).reshape(B * heads, d, H * W)

    q = to_heads(q).astype(jnp.float32)
    k = to_heads(k).astype(jnp.float32)
    v = to_heads(v)
    q = q / jnp.maximum(jnp.sqrt(jnp.sum(q * q, -1, keepdims=True)), 1e-12)
    k = k / jnp.maximum(jnp.sqrt(jnp.sum(k * k, -1, keepdims=True)), 1e-12)
    temp = p['temp'].reshape(1, heads, 1, 1)
    q = (q.reshape(B, heads, d, H * W) * temp).reshape(B * heads, d, H * W)

    out = attention_fused(q, k, v)                      # (B*heads, d, HW)
    out = jnp.transpose(out.reshape(B, heads, d, H * W), (0, 3, 1, 2))
    out = out.reshape(B, H, W, C)
    x = conv1x1(out, p['proj'], res=x)                  # fused residual
    # --- GDFN (LayerNorm fused into pin, gelu-gate fused into dwconv) ---
    z = conv1x1(x, p['pin'], ln=(p['n2']['w'], p['n2']['b']))
    z = dwconv3x3(z, p['ffn_dw'], gate=True)
    return conv1x1(z, p['pout'], res=x, act=final_act, act_after_res=True)


# --- Swin BasicLayer ---------------------------------------------------------
def rel_pos_index(ws):
    coords = np.stack(np.meshgrid(np.arange(ws), np.arange(ws), indexing='ij'))
    cf = coords.reshape(2, -1)
    rel = (cf[:, :, None] - cf[:, None, :]).transpose(1, 2, 0).astype(np.int64)
    rel[:, :, 0] += ws - 1
    rel[:, :, 1] += ws - 1
    rel[:, :, 0] *= 2 * ws - 1
    return rel.sum(-1)


def compute_attn_mask(H, W, ws, sh):
    if sh == 0:
        return None
    img = np.zeros((1, H, W, 1), np.float32)
    cnt = 0
    for hs in (slice(0, -ws), slice(-ws, -sh), slice(-sh, None)):
        for wsl in (slice(0, -ws), slice(-ws, -sh), slice(-sh, None)):
            img[:, hs, wsl, :] = cnt
            cnt += 1
    mw = img.reshape(1, H // ws, ws, W // ws, ws, 1)
    mw = mw.transpose(0, 1, 3, 2, 4, 5).reshape(-1, ws * ws)
    am = mw[:, None, :] - mw[:, :, None]
    return np.where(am != 0, -100.0, 0.0).astype(np.float32)


def make_swin_block(rng, dim, res, heads, window, shift):
    H, W = res
    ws, sh = window, shift
    if min(H, W) <= window:
        ws, sh = min(H, W), 0
    N = ws * ws
    nW = (H // ws) * (W // ws)
    rpi = rel_pos_index(ws).reshape(-1)
    rpb = rng.normal(((2 * ws - 1) * (2 * ws - 1), heads))
    rpb_bias = rpb[jnp.asarray(rpi)].reshape(N, N, heads)
    rpb_bias = jnp.transpose(rpb_bias, (2, 0, 1))               # (heads, N, N)
    mask = compute_attn_mask(H, W, ws, sh)
    if mask is None:
        bias_table = jnp.broadcast_to(rpb_bias[None], (nW, heads, N, N))
    else:
        bias_table = rpb_bias[None] + jnp.asarray(mask)[:, None]
    bias_table = bias_table.reshape(nW * heads, N, N).astype(jnp.bfloat16)
    return {'ws': ws, 'shift': sh, 'heads': heads,
            'n1': make_ln(dim), 'n2': make_ln(dim),
            'qkv': make_conv1(rng, 3 * dim, dim, True),
            'proj': make_conv1(rng, dim, dim, True),
            'bias_table': bias_table,
            'fc1': make_conv1(rng, 4 * dim, dim, True),
            'fc2': make_conv1(rng, dim, 4 * dim, True)}


def make_basic_layer(rng, dim, res, depth, heads, window):
    return [make_swin_block(rng, dim, res, heads, window,
                            0 if i % 2 == 0 else window // 2)
            for i in range(depth)]


def swin_block_forward(x, p):
    B, H, W, C = x.shape
    ws, sh, heads = p['ws'], p['shift'], p['heads']
    d = C // heads
    N = ws * ws
    shortcut = x
    y = x
    if sh > 0:
        y = jnp.roll(y, shift=(-sh, -sh), axis=(1, 2))
    xw = window_partition(y, ws).reshape(-1, N, C)               # (nWB, N, C)
    nWB = xw.shape[0]
    qkv = matmul_fused(xw.reshape(nWB * N, C), p['qkv']['w'], p['qkv']['b'],
                       ln=(p['n1']['w'], p['n1']['b']))          # LN fused
    qkv = qkv.reshape(nWB, N, 3, heads, d)
    qkv = jnp.transpose(qkv, (2, 0, 3, 1, 4))
    q, k, v = qkv[0], qkv[1], qkv[2]
    q = (q * (d ** -0.5)).reshape(nWB * heads, N, d)
    k = k.reshape(nWB * heads, N, d)
    v = v.reshape(nWB * heads, N, d)
    bias = p['bias_table']
    if B > 1:
        bias = jnp.tile(bias, (B, 1, 1))   # TODO(synk): index_map modulo for B>1
    out = attention_fused(q, k, v, bias)                         # (nWB*h, N, d)
    out = jnp.transpose(out.reshape(nWB, heads, N, d), (0, 2, 1, 3))
    out = out.reshape(nWB * N, C)
    out = matmul_fused(out, p['proj']['w'], p['proj']['b'])
    out = out.reshape(nWB, ws, ws, C)
    y = window_reverse(out, ws, H, W)
    if sh > 0:
        y = jnp.roll(y, shift=(sh, sh), axis=(1, 2))
    x = shortcut + y
    # MLP (LayerNorm + GELU fused into fc1, residual fused into fc2)
    rows = x.reshape(B * H * W, C)
    h1 = matmul_fused(rows, p['fc1']['w'], p['fc1']['b'], act='gelu',
                      ln=(p['n2']['w'], p['n2']['b']))
    h2 = matmul_fused(h1, p['fc2']['w'], p['fc2']['b'], res=rows)
    return h2.reshape(B, H, W, C)


def basic_layer_forward(x, blocks):
    for blk in blocks:
        x = swin_block_forward(x, blk)
    return x


# --- RB / Head / Tail --------------------------------------------------------
def make_rb(rng, channel):
    return {'c1': make_conv3(rng, channel, channel, True),
            'c2': make_conv3(rng, channel, channel, True),
            'in_g': jnp.ones((channel,), jnp.float32),
            'in_b': jnp.zeros((channel,), jnp.float32),
            'half': channel // 2}


def rb_forward(x, p):
    out = conv3x3(x, p['c1'], act='lrelu',
                  hin=(p['in_g'], p['in_b'], p['half']))          # HIN fused
    return conv3x3(out, p['c2'], act='lrelu', res=x)              # residual fused


def make_head(rng, dim):
    return {'c1': make_conv3(rng, dim // 2, 1, True),
            'c2': make_conv3(rng, dim // 2, dim // 2, True),
            'c3': make_conv3(rng, dim, dim // 2, True),
            'alpha': jnp.full((dim,), 0.01, jnp.float32)}


def head_forward(x, p):
    y = conv3x3(x, p['c1'], act='relu')
    y = conv3x3(y, p['c2'], act='relu')
    # x + alpha * conv(y)  (DropPath == identity at inference), fused epilogue
    return conv3x3(y, p['c3'], res=x, scale=p['alpha'])


def make_tail(rng, dim):
    return {'c1': make_conv3(rng, dim, dim, True),
            'c2': make_conv3(rng, dim // 2, dim, True),
            'c3': make_conv3(rng, dim // 2, dim // 2, True),
            'c4': make_conv3(rng, 1, dim // 2, True)}


def tail_forward(x, p):
    y = conv3x3(x, p['c1'], act='relu')
    y = conv3x3(y, p['c2'], act='relu')
    y = conv3x3(y, p['c3'], act='relu')
    return conv3x3(y, p['c4'])


# --- SWin_Stage / Grad / Denoise_Block ---------------------------------------
def make_swin_stage(rng, dim, resolution, depth):
    return {'dim': dim,
            'swin_f': make_basic_layer(rng, dim, (resolution, resolution), depth, 4, 8),
            'catt_f': make_tblock(rng, dim, dim // 16),
            'mm1': make_conv3(rng, 2 * dim, 2 * dim, True),
            'mm2': make_conv3(rng, 2 * dim, 2 * dim, True),
            'soft_thr': jnp.full((2 * dim,), 0.005, jnp.float32),
            'swin_b': make_basic_layer(rng, dim, (resolution, resolution), depth, 4, 8),
            'catt_b': make_tblock(rng, dim, dim // 16),
            'm1': make_conv3(rng, 2 * dim, 2 * dim, True),
            'm2': make_conv3(rng, dim, 2 * dim, True),
            'm3': make_conv3(rng, dim, dim, True)}


def swin_stage_forward(x, p):
    dim = p['dim']
    a = basic_layer_forward(x, p['swin_f'])
    c = tblock_forward(x, p['catt_f'])
    xin = conv3x3(jnp.concatenate([a, c], axis=-1), p['mm1'], act='relu')
    xout = conv3x3(xin, p['mm2'], act='softthr', aux=p['soft_thr'])  # fused
    o1, o2 = xout[..., :dim], xout[..., dim:]
    x1 = basic_layer_forward(o1, p['swin_b']) + x
    x2 = tblock_forward(o2, p['catt_b']) + x
    m = conv3x3(jnp.concatenate([x1, x2], axis=-1), p['m1'], act='relu')
    m = conv3x3(m, p['m2'], act='relu')
    return conv3x3(m, p['m3'])


def make_grad(rng, in_ch, nf, heads):
    return {'c1': make_conv3(rng, nf, in_ch, True),
            'prelu': jnp.asarray(0.25, jnp.float32),
            'c2': make_conv3(rng, nf, nf, True),
            'tb': make_tblock(rng, nf, heads)}


def grad_forward(x, p):
    y = conv3x3(x, p['c1'], act='prelu', aux=p['prelu'])
    y = conv3x3(y, p['c2'])
    return tblock_forward(y, p['tb'], final_act='sigmoid')   # sigmoid fused


def make_denoise_block(rng, dl, resolution):
    r = [1, 2, 4]
    return {'r': r,
            'grad1': make_grad(rng, r[0] ** 2 + 2 * dl[0], dl[0], dl[0] // 16),
            'swin1': make_swin_stage(rng, dl[0], resolution, 2),
            'grad2': make_grad(rng, r[1] ** 2 + 2 * dl[1], dl[1], dl[1] // 16),
            'swin2': make_swin_stage(rng, dl[1], resolution // 2, 2),
            'grad3': make_grad(rng, r[2] ** 2 + 2 * dl[2], dl[2], dl[2] // 16),
            'swin3': make_swin_stage(rng, dl[2], resolution // 4, 2)}


def denoise_block_forward(xf, phi_fw, phi_bw, phitb_unshuf, p):
    xf = list(xf)
    for idx in range(3):
        r = p['r'][idx]
        xi = xf[idx]
        x_s = pixel_shuffle(xi, r)
        b, hh, ww, c = x_s.shape
        imgs = jnp.transpose(x_s, (0, 3, 1, 2)).reshape(b * c, hh, ww)
        pp = phitphi_img(imgs, phi_fw, phi_bw)
        pp = jnp.transpose(pp.reshape(b, c, hh, ww), (0, 2, 3, 1))
        pp = pixel_unshuffle(pp, r)
        grad_in = jnp.concatenate([xi, pp, phitb_unshuf[idx]], axis=-1)
        grad = grad_forward(grad_in, p['grad%d' % (idx + 1)])
        xi = xi - grad
        xf[idx] = swin_stage_forward(xi, p['swin%d' % (idx + 1)])
    return xf


# --- Mid_Dec / Mid_Enc / Mid_Fusion ------------------------------------------
def make_mid_dec(rng, dl):
    return {'rb3': make_rb(rng, dl[2]),
            'up2': make_conv3(rng, dl[1] * 4, dl[2], False),
            'merge2': make_conv1(rng, dl[1], dl[1] * 2, True),
            'rb2': make_rb(rng, dl[1]),
            'up1': make_conv3(rng, dl[0] * 4, dl[1], False),
            'merge1': make_conv1(rng, dl[0], dl[0] * 2, True),
            'rb1': make_rb(rng, dl[0])}


def mid_dec_forward(xf, p):
    x128 = rb_forward(xf[2], p['rb3'])
    up = pixel_shuffle(conv3x3(x128, p['up2']), 2)
    x64 = rb_forward(conv1x1(jnp.concatenate([up, xf[1]], -1), p['merge2']),
                     p['rb2']) + xf[1]
    up = pixel_shuffle(conv3x3(x64, p['up1']), 2)
    x32 = rb_forward(conv1x1(jnp.concatenate([up, xf[0]], -1), p['merge1']),
                     p['rb1']) + xf[0]
    return [x32, x64, x128]


def make_mid_enc(rng, dl):
    return {'rb1': make_rb(rng, dl[0]),
            'down1': make_conv3(rng, dl[1] // 4, dl[0], False),
            'merge1': make_conv1(rng, dl[1], 2 * dl[1], True),
            'rb2': make_rb(rng, dl[1]),
            'down2': make_conv3(rng, dl[2] // 4, dl[1], False),
            'merge2': make_conv1(rng, dl[2], 2 * dl[2], True),
            'rb3': make_rb(rng, dl[2])}


def mid_enc_forward(xf, p):
    x32 = rb_forward(xf[0], p['rb1'])
    dn = pixel_unshuffle(conv3x3(x32, p['down1']), 2)
    x64 = rb_forward(conv1x1(jnp.concatenate([dn, xf[1]], -1), p['merge1']),
                     p['rb2']) + xf[1]
    dn = pixel_unshuffle(conv3x3(x64, p['down2']), 2)
    x128 = rb_forward(conv1x1(jnp.concatenate([dn, xf[2]], -1), p['merge2']),
                      p['rb3']) + xf[2]
    return [x32, x64, x128]


# --- Unet_Enc / Unet_Dec / Feature_Dec ----------------------------------------
def make_unet_enc(rng, dl):
    return {'head': make_head(rng, dl[0]),
            'enh1': make_tblock(rng, dl[0], 2), 'rb1': make_rb(rng, dl[0]),
            'down1': make_conv3(rng, dl[1] // 4, dl[0], False),
            'enh2': make_tblock(rng, dl[1], 4), 'rb2': make_rb(rng, dl[1]),
            'down2': make_conv3(rng, dl[2] // 4, dl[1], False),
            'enh3': make_tblock(rng, dl[2], 8), 'rb3': make_rb(rng, dl[2])}


def unet_enc_forward(x, p):
    x32 = rb_forward(tblock_forward(head_forward(x, p['head']), p['enh1']),
                     p['rb1'])
    x64 = rb_forward(tblock_forward(
        pixel_unshuffle(conv3x3(x32, p['down1']), 2), p['enh2']), p['rb2'])
    x128 = rb_forward(tblock_forward(
        pixel_unshuffle(conv3x3(x64, p['down2']), 2), p['enh3']), p['rb3'])
    return [x32, x64, x128]


def make_unet_dec(rng, dl, with_alpha=False):
    p = {'rb3': make_rb(rng, dl[2]), 'enh3': make_tblock(rng, dl[2], 8),
         'up2': make_conv3(rng, dl[1] * 4, dl[2], False),
         'merge2': make_conv1(rng, dl[1], dl[1] * 2, True),
         'rb2': make_rb(rng, dl[1]), 'enh2': make_tblock(rng, dl[1], 4),
         'up1': make_conv3(rng, dl[0] * 4, dl[1], False),
         'merge1': make_conv1(rng, dl[0], dl[0] * 2, True),
         'rb1': make_rb(rng, dl[0]), 'enh1': make_tblock(rng, dl[0], 2),
         'tail': make_tail(rng, dl[0])}
    if with_alpha:
        p['alpha'] = jnp.asarray(0.1, jnp.float32)
    return p


def unet_dec_forward(xf, p):
    t = pixel_shuffle(conv3x3(tblock_forward(rb_forward(xf[2], p['rb3']),
                                             p['enh3']), p['up2']), 2)
    x64 = conv1x1(jnp.concatenate([t, xf[1]], -1), p['merge2'])
    t = pixel_shuffle(conv3x3(tblock_forward(rb_forward(x64, p['rb2']),
                                             p['enh2']), p['up1']), 2)
    x32 = conv1x1(jnp.concatenate([t, xf[0]], -1), p['merge1'])
    out = tail_forward(tblock_forward(rb_forward(x32, p['rb1']), p['enh1']),
                       p['tail'])
    if 'alpha' in p:
        out = p['alpha'] * out
    return out


# ----------------------------------------------------------------------------
# PMD_Net
# ----------------------------------------------------------------------------
def build_pmd_net(key, layer_num=1, resolution=32, rate=10):
    rng = Rng(key)
    patch = resolution
    n_input = int(rate * 0.01 * resolution ** 2)
    fan_in = patch * patch
    fan_out = n_input * patch * patch
    phiw = rng.normal((n_input, patch * patch),
                      std=math.sqrt(2.0 / (fan_in + fan_out)))   # xavier_normal_
    dl = [32, 48, 64]
    stages = []
    for _ in range(layer_num - 1):
        stages.append(('denoise', make_denoise_block(rng, dl, resolution)))
        stages.append(('fusion', {'dec': make_mid_dec(rng, dl),
                                  'enc': make_mid_enc(rng, dl)}))
    stages.append(('denoise', make_denoise_block(rng, dl, resolution)))
    return {'patch': patch, 'layer_num': layer_num,
            'phi_fw': jnp.transpose(phiw).astype(jnp.bfloat16),   # (P*P, Mm)
            'phi_bw': phiw.astype(jnp.bfloat16),                  # (Mm, P*P)
            'enc': make_unet_enc(rng, dl),
            'stages': stages,
            'dec': make_unet_dec(rng, dl, with_alpha=False),
            'fdec': make_unet_dec(rng, dl, with_alpha=True)}


def pmd_net_forward(x_nchw, params):
    phi_fw, phi_bw = params['phi_fw'], params['phi_bw']
    ximg = x_nchw[:, 0]                                   # (B, H, W)
    meas, meta = phi_forward_img(ximg, phi_fw)            # F.conv2d(..., stride=P)
    phitb_img = phi_transpose_rows(meas, meta, phi_bw)    # F.conv_transpose2d
    phitb = phitb_img[..., None]                          # NHWC (B, H, W, 1)
    phitb_unshuf = [pixel_unshuffle(phitb, r) for r in (1, 2, 4)]

    xf = unet_enc_forward(phitb, params['enc'])
    shortcut = [jnp.zeros_like(t) for t in xf]
    L = params['layer_num']
    stages = params['stages']
    for i in range(L - 1):
        xf = denoise_block_forward(xf, phi_fw, phi_bw, phitb_unshuf,
                                   stages[2 * i][1])
        shortcut = [s + t for s, t in zip(shortcut, xf)]
        fus = stages[2 * i + 1][1]
        xf = mid_enc_forward(mid_dec_forward(xf, fus['dec']), fus['enc'])
    xf = denoise_block_forward(xf, phi_fw, phi_bw, phitb_unshuf,
                               stages[2 * (L - 1)][1])
    shortcut = [s + t for s, t in zip(shortcut, xf)]
    out = unet_dec_forward(xf, params['dec']) + \
        unet_dec_forward(shortcut, params['fdec'])
    return jnp.transpose(out, (0, 3, 1, 2)).astype(jnp.float32)   # NCHW


if __name__ == "__main__":
    key = jax.random.PRNGKey(0)
    pkey, xkey = jax.random.split(key)
    # resolution=32 so that patch_size matches the Phi stride; layer_num=1
    # keeps the synthetic run small.
    layer_num, resolution = 1, 32
    params = build_pmd_net(pkey, layer_num=layer_num,
                           resolution=resolution, rate=10)
    x = jax.random.normal(xkey, (1, 1, resolution, resolution), jnp.float32)
    out = pmd_net_forward(x, params)
    out = jax.block_until_ready(out)
    assert out.shape == (1, 1, resolution, resolution), out.shape
    assert bool(jnp.all(jnp.isfinite(out)))
    print("KERNEL_OK")
</pallas_src>

<mosaic_0001>
module attributes {stable_mosaic.version = 11 : i64} {
  func.func @kern(%arg0: i32, %arg1: memref<1x1024xbf16, #tpu.memory_space<vmem>>, %arg2: memref<1024x102xbf16, #tpu.memory_space<vmem>>, %arg3: memref<1x102xbf16, #tpu.memory_space<vmem>>) attributes {dimension_semantics = [#tpu.dimension_semantics<parallel>], iteration_bounds = array<i64: 1>, scalar_prefetch = 0 : i64, scratch_operands = 0 : i64, tpu.core_type = #tpu.core_type<tc>, window_params = [{transform_indices = @transform_0, window_bounds = array<i64: 1, 1024>}, {pipeline_mode = #tpu.pipeline_mode<synchronous>, transform_indices = @transform_1, window_bounds = array<i64: 1024, 102>}, {transform_indices = @transform_2, window_bounds = array<i64: 1, 102>}]} {
    %c0 = arith.constant 0 : index
    %c0_0 = arith.constant 0 : index
    %0 = vector.load %arg1[%c0, %c0_0] : memref<1x1024xbf16, #tpu.memory_space<vmem>>, vector<1x1024xbf16>
    %c0_1 = arith.constant 0 : index
    %c0_2 = arith.constant 0 : index
    %1 = vector.load %arg2[%c0_1, %c0_2] : memref<1024x102xbf16, #tpu.memory_space<vmem>>, vector<1024x102xbf16>
    %cst = arith.constant dense<0.000000e+00> : vector<1x102xf32>
    %2 = tpu.matmul %0, %1, %cst {dimension_numbers = #tpu.dot_dimension_numbers<[1], [0], [0], [1], [0, 0, 1, 1], [], []>} : vector<1x1024xbf16>, vector<1024x102xbf16>, vector<1x102xf32> -> vector<1x102xf32>
    %3 = arith.truncf %2 : vector<1x102xf32> to vector<1x102xbf16>
    %c0_3 = arith.constant 0 : index
    %c0_4 = arith.constant 0 : index
    %4 = vector.load %arg3[%c0_3, %c0_4] : memref<1x102xbf16, #tpu.memory_space<vmem>>, vector<1x102xbf16>
    tpu.vector_store %arg3[%c0_3, %c0_4], %3 {strides = array<i32>} : memref<1x102xbf16, #tpu.memory_space<vmem>>, vector<1x102xbf16>,
    return
  }
  func.func @transform_0(%arg0: i32) -> (i32, i32) {
    %c0_i32 = arith.constant 0 : i32
    %c0_i32_0 = arith.constant 0 : i32
    return %arg0, %c0_i32 : i32, i32
  }
  func.func @transform_1(%arg0: i32) -> (i32, i32) {
    %c0_i32 = arith.constant 0 : i32
    %c0_i32_0 = arith.constant 0 : i32
    %c0_i32_1 = arith.constant 0 : i32
    return %c0_i32, %c0_i32_0 : i32, i32
  }
  func.func @transform_2(%arg0: i32) -> (i32, i32) {
    %c0_i32 = arith.constant 0 : i32
    %c0_i32_0 = arith.constant 0 : i32
    return %arg0, %c0_i32 : i32, i32
  }
}

</mosaic_0001>

<llo_original>
// kernel: _matmul_fused_jit.1
$region0: #{_matmul_fused_jit.1}
  #allocation0 [shape = 'u32[]', space=smem, size = 0x4, offset = 0x4, fixed_abs, tag = 'smem constant byte address 0x4 - core index']
  #allocation1 [shape = 'u32[72,128]{1,0:T(1,128)}', space=vmem, size = 0x9000, scoped, tag = 'internal scratch']
  %s0 = inlined_call_operand.vmem [shape: bf16[1,1024], index: 0, kind: input, shape index: {}]
  %s1 = inlined_call_operand.vmem [shape: bf16[1024,102], index: 1, kind: input, shape index: {}]
  %s2 = inlined_call_operand.hbm [shape: bf16[1,102], index: 2, kind: output, shape index: {}]
  %s3 = sld [smem:[#allocation0]]
  $region18: #{_matmul_fused_jit.1} parent=0
    _
  %s5 = ssub.s32 1, %s3
  %s6 = scalar_select 0, %s5, %s3
  $region1: #{_matmul_fused_jit.1} parent=0
    #allocation2 [shape = 'u8[512]{0}', space=vmem, size = 0x400, scoped, tag = 'output window, operand 0, single buffered']
    #allocation3 [shape = 's32[1]{0}', space=sflag, size = 0x4, scoped, tag = 'scoped memory for _matmul_fused_jit.1']
    %7 = vsyncpa [#allocation3], 0
    // Predicated region
    $region2: #{_matmul_fused_jit.1} parent=1 // pred_check
      _
    $region3: #{_matmul_fused_jit.1} parent=1 // pred_check_branch
      %9 = sbr.rel (0) target = $region5
    $region4: #{_matmul_fused_jit.1} parent=1 // pred_region
      _
    $region5: #{_matmul_fused_jit.1} parent=1 // pred_fallthru
      _
    // Predicated region
    $region6: #{_matmul_fused_jit.1} parent=1 // pred_check
      _
    $region7: #{_matmul_fused_jit.1} parent=1 // pred_check_branch
      %11 = sbr.rel (0) target = $region9
    $region8: #{_matmul_fused_jit.1} parent=1 // pred_region
      _
    $region9: #{_matmul_fused_jit.1} parent=1 // pred_fallthru
      _
    %v12 = vld [vmem:[%s0] sm:$0xff]
    %v13 = vld [vmem:[%s1] sm:$0xf]
    %v14 = vld [vmem:[%s1 + $0x4] sm:$0xf]
    %v15 = vld [vmem:[%s1 + $0x8] sm:$0xf]
    %v16 = vld [vmem:[%s1 + $0xc] sm:$0xf]
    %v17 = vld [vmem:[%s1 + $0x10] sm:$0xf]
    %v18 = vld [vmem:[%s1 + $0x14] sm:$0xf]
    %v19 = vld [vmem:[%s1 + $0x18] sm:$0xf]
    %v20 = vld [vmem:[%s1 + $0x1c] sm:$0xf]
    %v21 = vld [vmem:[%s1 + $0x20] sm:$0xf]
    %v22 = vld [vmem:[%s1 + $0x24] sm:$0xf]
    %v23 = vld [vmem:[%s1 + $0x28] sm:$0xf]
    %v24 = vld [vmem:[%s1 + $0x2c] sm:$0xf]
    %v25 = vld [vmem:[%s1 + $0x30] sm:$0xf]
    %v26 = vld [vmem:[%s1 + $0x34] sm:$0xf]
    %v27 = vld [vmem:[%s1 + $0x38] sm:$0xf]
    %v28 = vld [vmem:[%s1 + $0x3c] sm:$0xf]
    %v29 = vld [vmem:[%s1 + $0x40] sm:$0xf]
    %v30 = vld [vmem:[%s1 + $0x44] sm:$0xf]
    %v31 = vld [vmem:[%s1 + $0x48] sm:$0xf]
    %v32 = vld [vmem:[%s1 + $0x4c] sm:$0xf]
    %v33 = vld [vmem:[%s1 + $0x50] sm:$0xf]
    %v34 = vld [vmem:[%s1 + $0x54] sm:$0xf]
    %v35 = vld [vmem:[%s1 + $0x58] sm:$0xf]
    %v36 = vld [vmem:[%s1 + $0x5c] sm:$0xf]
    %v37 = vld [vmem:[%s1 + $0x60] sm:$0xf]
    %v38 = vld [vmem:[%s1 + $0x64] sm:$0xf]
    %v39 = vld [vmem:[%s1 + $0x68] sm:$0xf]
    %v40 = vld [vmem:[%s1 + $0x6c] sm:$0xf]
    %v41 = vld [vmem:[%s1 + $0x70] sm:$0xf]
    %v42 = vld [vmem:[%s1 + $0x74] sm:$0xf]
    %v43 = vld [vmem:[%s1 + $0x78] sm:$0xf]
    %v44 = vld [vmem:[%s1 + $0x7c] sm:$0xf]
    %v45 = vld [vmem:[%s1 + $0x80] sm:$0xf]
    %v46 = vld [vmem:[%s1 + $0x84] sm:$0xf]
    %v47 = vld [vmem:[%s1 + $0x88] sm:$0xf]
    %v48 = vld [vmem:[%s1 + $0x8c] sm:$0xf]
    %v49 = vld [vmem:[%s1 + $0x90] sm:$0xf]
    %v50 = vld [vmem:[%s1 + $0x94] sm:$0xf]
    %v51 = vld [vmem:[%s1 + $0x98] sm:$0xf]
    %v52 = vld [vmem:[%s1 + $0x9c] sm:$0xf]
    %v53 = vld [vmem:[%s1 + $0xa0] sm:$0xf]
    %v54 = vld [vmem:[%s1 + $0xa4] sm:$0xf]
    %v55 = vld [vmem:[%s1 + $0xa8] sm:$0xf]
    %v56 = vld [vmem:[%s1 + $0xac] sm:$0xf]
    %v57 = vld [vmem:[%s1 + $0xb0] sm:$0xf]
    %v58 = vld [vmem:[%s1 + $0xb4] sm:$0xf]
    %v59 = vld [vmem:[%s1 + $0xb8] sm:$0xf]
    %v60 = vld [vmem:[%s1 + $0xbc] sm:$0xf]
    %v61 = vld [vmem:[%s1 + $0xc0] sm:$0xf]
    %v62 = vld [vmem:[%s1 + $0xc4] sm:$0xf]
    %v63 = vld [vmem:[%s1 + $0xc8] sm:$0xf]
    %v64 = vld [vmem:[%s1 + $0xcc] sm:$0xf]
    %v65 = vld [vmem:[%s1 + $0xd0] sm:$0xf]
    %v66 = vld [vmem:[%s1 + $0xd4] sm:$0xf]
    %v67 = vld [vmem:[%s1 + $0xd8] sm:$0xf]
    %v68 = vld [vmem:[%s1 + $0xdc] sm:$0xf]
    %v69 = vld [vmem:[%s1 + $0xe0] sm:$0xf]
    %v70 = vld [vmem:[%s1 + $0xe4] sm:$0xf]
    %v71 = vld [vmem:[%s1 + $0xe8] sm:$0xf]
    %v72 = vld [vmem:[%s1 + $0xec] sm:$0xf]
    %v73 = vld [vmem:[%s1 + $0xf0] sm:$0xf]
    %v74 = vld [vmem:[%s1 + $0xf4] sm:$0xf]
    %v75 = vld [vmem:[%s1 + $0xf8] sm:$0xf]
    %v76 = vld [vmem:[%s1 + $0xfc] sm:$0xf]
    %v77 = vld [vmem:[%s1 + $0x100] sm:$0xf]
    %v78 = vld [vmem:[%s1 + $0x104] sm:$0xf]
    %v79 = vld [vmem:[%s1 + $0x108] sm:$0xf]
    %v80 = vld [vmem:[%s1 + $0x10c] sm:$0xf]
    %v81 = vld [vmem:[%s1 + $0x110] sm:$0xf]
    %v82 = vld [vmem:[%s1 + $0x114] sm:$0xf]
    %v83 = vld [vmem:[%s1 + $0x118] sm:$0xf]
    %v84 = vld [vmem:[%s1 + $0x11c] sm:$0xf]
    %v85 = vld [vmem:[%s1 + $0x120] sm:$0xf]
    %v86 = vld [vmem:[%s1 + $0x124] sm:$0xf]
    %v87 = vld [vmem:[%s1 + $0x128] sm:$0xf]
    %v88 = vld [vmem:[%s1 + $0x12c] sm:$0xf]
    %v89 = vld [vmem:[%s1 + $0x130] sm:$0xf]
    %v90 = vld [vmem:[%s1 + $0x134] sm:$0xf]
    %v91 = vld [vmem:[%s1 + $0x138] sm:$0xf]
    %v92 = vld [vmem:[%s1 + $0x13c] sm:$0xf]
    %v93 = vld [vmem:[%s1 + $0x140] sm:$0xf]
    %v94 = vld [vmem:[%s1 + $0x144] sm:$0xf]
    %v95 = vld [vmem:[%s1 + $0x148] sm:$0xf]
    %v96 = vld [vmem:[%s1 + $0x14c] sm:$0xf]
    %v97 = vld [vmem:[%s1 + $0x150] sm:$0xf]
    %v98 = vld [vmem:[%s1 + $0x154] sm:$0xf]
    %v99 = vld [vmem:[%s1 + $0x158] sm:$0xf]
    %v100 = vld [vmem:[%s1 + $0x15c] sm:$0xf]
    %v101 = vld [vmem:[%s1 + $0x160] sm:$0xf]
    %v102 = vld [vmem:[%s1 + $0x164] sm:$0xf]
    %v103 = vld [vmem:[%s1 + $0x168] sm:$0xf]
    %v104 = vld [vmem:[%s1 + $0x16c] sm:$0xf]
    %v105 = vld [vmem:[%s1 + $0x170] sm:$0xf]
    %v106 = vld [vmem:[%s1 + $0x174] sm:$0xf]
    %v107 = vld [vmem:[%s1 + $0x178] sm:$0xf]
    %v108 = vld [vmem:[%s1 + $0x17c] sm:$0xf]
    %v109 = vld [vmem:[%s1 + $0x180] sm:$0xf]
    %v110 = vld [vmem:[%s1 + $0x184] sm:$0xf]
    %v111 = vld [vmem:[%s1 + $0x188] sm:$0xf]
    %v112 = vld [vmem:[%s1 + $0x18c] sm:$0xf]
    %v113 = vld [vmem:[%s1 + $0x190] sm:$0xf]
    %v114 = vld [vmem:[%s1 + $0x194] sm:$0xf]
    %v115 = vld [vmem:[%s1 + $0x198] sm:$0xf]
    %v116 = vld [vmem:[%s1 + $0x19c] sm:$0xf]
    %v117 = vld [vmem:[%s1 + $0x1a0] sm:$0xf]
    %v118 = vld [vmem:[%s1 + $0x1a4] sm:$0xf]
    %v119 = vld [vmem:[%s1 + $0x1a8] sm:$0xf]
    %v120 = vld [vmem:[%s1 + $0x1ac] sm:$0xf]
    %v121 = vld [vmem:[%s1 + $0x1b0] sm:$0xf]
    %v122 = vld [vmem:[%s1 + $0x1b4] sm:$0xf]
    %v123 = vld [vmem:[%s1 + $0x1b8] sm:$0xf]
    %v124 = vld [vmem:[%s1 + $0x1bc] sm:$0xf]
    %v125 = vld [vmem:[%s1 + $0x1c0] sm:$0xf]
    %v126 = vld [vmem:[%s1 + $0x1c4] sm:$0xf]
    %v127 = vld [vmem:[%s1 + $0x1c8] sm:$0xf]
    %v128 = vld [vmem:[%s1 + $0x1cc] sm:$0xf]
    %v129 = vld [vmem:[%s1 + $0x1d0] sm:$0xf]
    %v130 = vld [vmem:[%s1 + $0x1d4] sm:$0xf]
    %v131 = vld [vmem:[%s1 + $0x1d8] sm:$0xf]
    %v132 = vld [vmem:[%s1 + $0x1dc] sm:$0xf]
    %v133 = vld [vmem:[%s1 + $0x1e0] sm:$0xf]
    %v134 = vld [vmem:[%s1 + $0x1e4] sm:$0xf]
    %v135 = vld [vmem:[%s1 + $0x1e8] sm:$0xf]
    %v136 = vld [vmem:[%s1 + $0x1ec] sm:$0xf]
    %v137 = vld [vmem:[%s1 + $0x1f0] sm:$0xf]
    %v138 = vld [vmem:[%s1 + $0x1f4] sm:$0xf]
    %v139 = vld [vmem:[%s1 + $0x1f8] sm:$0xf]
    %v140 = vld [vmem:[%s1 + $0x1fc] sm:$0xf]
    %142 = vst [vmem:[#allocation1] ss:$9 sm:$0xff] %v12
    %v143 = vld [vmem:[#allocation1] sm:$0xff]
    %v144 = vld [vmem:[#allocation1 + $0x9] sm:$0xff]
    %v145 = vld [vmem:[#allocation1 + $0x12] sm:$0xff]
    %v146 = vld [vmem:[#allocation1 + $0x1b] sm:$0xff]
    %v147 = vld [vmem:[#allocation1 + $0x24] sm:$0xff]
    %v148 = vld [vmem:[#allocation1 + $0x2d] sm:$0xff]
    %v149 = vld [vmem:[#allocation1 + $0x36] sm:$0xff]
    %v150 = vld [vmem:[#allocation1 + $0x3f] sm:$0xff]
    %v287 = vunpack.c.l.b16 %v13
    %v288 = vunpack.c.l.b16 %v14
    %v289 = vunpack.c.l.b16 %v15
    %v290 = vunpack.c.l.b16 %v16
    %v291 = vunpack.c.l.b16 %v17
    %v292 = vunpack.c.l.b16 %v18
    %v293 = vunpack.c.l.b16 %v19
    %v294 = vunpack.c.l.b16 %v20
    %v295 = vunpack.c.l.b16 %v21
    %v296 = vunpack.c.l.b16 %v22
    %v297 = vunpack.c.l.b16 %v23
    %v298 = vunpack.c.l.b16 %v24
    %v299 = vunpack.c.l.b16 %v25
    %v300 = vunpack.c.l.b16 %v26
    %v301 = vunpack.c.l.b16 %v27
    %v302 = vunpack.c.l.b16 %v28
    %v303 = vunpack.c.l.b16 %v29
    %v304 = vunpack.c.l.b16 %v30
    %v305 = vunpack.c.l.b16 %v31
    %v306 = vunpack.c.l.b16 %v32
    %v307 = vunpack.c.l.b16 %v33
    %v308 = vunpack.c.l.b16 %v34
    %v309 = vunpack.c.l.b16 %v35
    %v310 = vunpack.c.l.b16 %v36
    %v311 = vunpack.c.l.b16 %v37
    %v312 = vunpack.c.l.b16 %v38
    %v313 = vunpack.c.l.b16 %v39
    %v314 = vunpack.c.l.b16 %v40
    %v315 = vunpack.c.l.b16 %v41
    %v316 = vunpack.c.l.b16 %v42
    %v317 = vunpack.c.l.b16 %v43
    %v318 = vunpack.c.l.b16 %v44
    %v319 = vunpack.c.l.b16 %v45
    %v320 = vunpack.c.l.b16 %v46
    %v321 = vunpack.c.l.b16 %v47
    %v322 = vunpack.c.l.b16 %v48
    %v323 = vunpack.c.l.b16 %v49
    %v324 = vunpack.c.l.b16 %v50
    %v325 = vunpack.c.l.b16 %v51
    %v326 = vunpack.c.l.b16 %v52
    %v327 = vunpack.c.l.b16 %v53
    %v328 = vunpack.c.l.b16 %v54
    %v329 = vunpack.c.l.b16 %v55
    %v330 = vunpack.c.l.b16 %v56
    %v331 = vunpack.c.l.b16 %v57
    %v332 = vunpack.c.l.b16 %v58
    %v333 = vunpack.c.l.b16 %v59
    %v334 = vunpack.c.l.b16 %v60
    %v335 = vunpack.c.l.b16 %v61
    %v336 = vunpack.c.l.b16 %v62
    %v337 = vunpack.c.l.b16 %v63
    %v338 = vunpack.c.l.b16 %v64
    %v339 = vunpack.c.l.b16 %v65
    %v340 = vunpack.c.l.b16 %v66
    %v341 = vunpack.c.l.b16 %v67
    %v342 = vunpack.c.l.b16 %v68
    %v343 = vunpack.c.l.b16 %v69
    %v344 = vunpack.c.l.b16 %v70
    %v345 = vunpack.c.l.b16 %v71
    %v346 = vunpack.c.l.b16 %v72
    %v347 = vunpack.c.l.b16 %v73
    %v348 = vunpack.c.l.b16 %v74
    %v349 = vunpack.c.l.b16 %v75
    %v350 = vunpack.c.l.b16 %v76
    %v351 = vunpack.c.l.b16 %v77
    %v352 = vunpack.c.l.b16 %v78
    %v353 = vunpack.c.l.b16 %v79
    %v354 = vunpack.c.l.b16 %v80
    %v355 = vunpack.c.l.b16 %v81
    %v356 = vunpack.c.l.b16 %v82
    %v357 = vunpack.c.l.b16 %v83
    %v358 = vunpack.c.l.b16 %v84
    %v359 = vunpack.c.l.b16 %v85
    %v360 = vunpack.c.l.b16 %v86
    %v361 = vunpack.c.l.b16 %v87
    %v362 = vunpack.c.l.b16 %v88
    %v363 = vunpack.c.l.b16 %v89
    %v364 = vunpack.c.l.b16 %v90
    %v365 = vunpack.c.l.b16 %v91
    %v366 = vunpack.c.l.b16 %v92
    %v367 = vunpack.c.l.b16 %v93
    %v368 = vunpack.c.l.b16 %v94
    %v369 = vunpack.c.l.b16 %v95
    %v370 = vunpack.c.l.b16 %v96
    %v371 = vunpack.c.l.b16 %v97
    %v372 = vunpack.c.l.b16 %v98
    %v373 = vunpack.c.l.b16 %v99
    %v374 = vunpack.c.l.b16 %v100
    %v375 = vunpack.c.l.b16 %v101
    %v376 = vunpack.c.l.b16 %v102
    %v377 = vunpack.c.l.b16 %v103
    %v378 = vunpack.c.l.b16 %v104
    %v379 = vunpack.c.l.b16 %v105
    %v380 = vunpack.c.l.b16 %v106
    %v381 = vunpack.c.l.b16 %v107
    %v382 = vunpack.c.l.b16 %v108
    %v383 = vunpack.c.l.b16 %v109
    %v384 = vunpack.c.l.b16 %v110
    %v385 = vunpack.c.l.b16 %v111
    %v386 = vunpack.c.l.b16 %v112
    %v387 = vunpack.c.l.b16 %v113
    %v388 = vunpack.c.l.b16 %v114
    %v389 = vunpack.c.l.b16 %v115
    %v390 = vunpack.c.l.b16 %v116
    %v391 = vunpack.c.l.b16 %v117
    %v392 = vunpack.c.l.b16 %v118
    %v393 = vunpack.c.l.b16 %v119
    %v394 = vunpack.c.l.b16 %v120
    %v395 = vunpack.c.l.b16 %v121
    %v396 = vunpack.c.l.b16 %v122
    %v397 = vunpack.c.l.b16 %v123
    %v398 = vunpack.c.l.b16 %v124
    %v399 = vunpack.c.l.b16 %v125
    %v400 = vunpack.c.l.b16 %v126
    %v401 = vunpack.c.l.b16 %v127
    %v402 = vunpack.c.l.b16 %v128
    %v403 = vunpack.c.l.b16 %v129
    %v404 = vunpack.c.l.b16 %v130
    %v405 = vunpack.c.l.b16 %v131
    %v406 = vunpack.c.l.b16 %v132
    %v407 = vunpack.c.l.b16 %v133
    %v408 = vunpack.c.l.b16 %v134
    %v409 = vunpack.c.l.b16 %v135
    %v410 = vunpack.c.l.b16 %v136
    %v411 = vunpack.c.l.b16 %v137
    %v412 = vunpack.c.l.b16 %v138
    %v413 = vunpack.c.l.b16 %v139
    %v414 = vunpack.c.l.b16 %v140
    %v415 = vpack.c.b16 %v288, %v287
    %v416 = vpack.c.b16 %v290, %v289
    %v417 = vpack.c.b16 %v292, %v291
    %v418 = vpack.c.b16 %v294, %v293
    %v419 = vpack.c.b16 %v296, %v295
    %v420 = vpack.c.b16 %v298, %v297
    %v421 = vpack.c.b16 %v300, %v299
    %v422 = vpack.c.b16 %v302, %v301
    %v423 = vpack.c.b16 %v304, %v303
    %v424 = vpack.c.b16 %v306, %v305
    %v425 = vpack.c.b16 %v308, %v307
    %v426 = vpack.c.b16 %v310, %v309
    %v427 = vpack.c.b16 %v312, %v311
    %v428 = vpack.c.b16 %v314, %v313
    %v429 = vpack.c.b16 %v316, %v315
    %v430 = vpack.c.b16 %v318, %v317
    %v431 = vpack.c.b16 %v320, %v319
    %v432 = vpack.c.b16 %v322, %v321
    %v433 = vpack.c.b16 %v324, %v323
    %v434 = vpack.c.b16 %v326, %v325
    %v435 = vpack.c.b16 %v328, %v327
    %v436 = vpack.c.b16 %v330, %v329
    %v437 = vpack.c.b16 %v332, %v331
    %v438 = vpack.c.b16 %v334, %v333
    %v439 = vpack.c.b16 %v336, %v335
    %v440 = vpack.c.b16 %v338, %v337
    %v441 = vpack.c.b16 %v340, %v339
    %v442 = vpack.c.b16 %v342, %v341
    %v443 = vpack.c.b16 %v344, %v343
    %v444 = vpack.c.b16 %v346, %v345
    %v445 = vpack.c.b16 %v348, %v347
    %v446 = vpack.c.b16 %v350, %v349
    %v447 = vpack.c.b16 %v352, %v351
    %v448 = vpack.c.b16 %v354, %v353
    %v449 = vpack.c.b16 %v356, %v355
    %v450 = vpack.c.b16 %v358, %v357
    %v451 = vpack.c.b16 %v360, %v359
    %v452 = vpack.c.b16 %v362, %v361
    %v453 = vpack.c.b16 %v364, %v363
    %v454 = vpack.c.b16 %v366, %v365
    %v455 = vpack.c.b16 %v368, %v367
    %v456 = vpack.c.b16 %v370, %v369
    %v457 = vpack.c.b16 %v372, %v371
    %v458 = vpack.c.b16 %v374, %v373
    %v459 = vpack.c.b16 %v376, %v375
    %v460 = vpack.c.b16 %v378, %v377
    %v461 = vpack.c.b16 %v380, %v379
    %v462 = vpack.c.b16 %v382, %v381
    %v463 = vpack.c.b16 %v384, %v383
    %v464 = vpack.c.b16 %v386, %v385
    %v465 = vpack.c.b16 %v388, %v387
    %v466 = vpack.c.b16 %v390, %v389
    %v467 = vpack.c.b16 %v392, %v391
    %v468 = vpack.c.b16 %v394, %v393
    %v469 = vpack.c.b16 %v396, %v395
    %v470 = vpack.c.b16 %v398, %v397
    %v471 = vpack.c.b16 %v400, %v399
    %v472 = vpack.c.b16 %v402, %v401
    %v473 = vpack.c.b16 %v404, %v403
    %v474 = vpack.c.b16 %v406, %v405
    %v475 = vpack.c.b16 %v408, %v407
    %v476 = vpack.c.b16 %v410, %v409
    %v477 = vpack.c.b16 %v412, %v411
    %v478 = vpack.c.b16 %v414, %v413
    %543 = vmatpush.bf16.msra.mxu0 %v422
    %544 = vmatpush.bf16.msra.mxu0 %v421
    %545 = vmatpush.bf16.msra.mxu0 %v420
    %546 = vmatpush.bf16.msra.mxu0 %v419
    %547 = vmatpush.bf16.msra.mxu0 %v418
    %548 = vmatpush.bf16.msra.mxu0 %v417
    %549 = vmatpush.bf16.msra.mxu0 %v416
    %550 = vmatpush.bf16.msra.mxu0 %v415
    %551 = vmatmul.bf16.gmra.mxu0 %v143
    %v552 = vpop.f32.mrf.mxu0
    %v553 = vadd.f32 0.0, %v552
    %v554 = vpop.f32.mrf.mxu0
    %555 = vdwg.mxu0
    %556 = vmatpush.bf16.msra.mxu0 %v430
    %557 = vmatpush.bf16.msra.mxu0 %v429
    %558 = vmatpush.bf16.msra.mxu0 %v428
    %559 = vmatpush.bf16.msra.mxu0 %v427
    %560 = vmatpush.bf16.msra.mxu0 %v426
    %561 = vmatpush.bf16.msra.mxu0 %v425
    %562 = vmatpush.bf16.msra.mxu0 %v424
    %563 = vmatpush.bf16.msra.mxu0 %v423
    %564 = vmatmul.bf16.gmra.mxu0 %v144
    %v565 = vpop.f32.mrf.mxu0
    %v566 = vadd.f32 %v553, %v565
    %v567 = vpop.f32.mrf.mxu0
    %568 = vdwg.mxu0
    %569 = vmatpush.bf16.msra.mxu0 %v438
    %570 = vmatpush.bf16.msra.mxu0 %v437
    %571 = vmatpush.bf16.msra.mxu0 %v436
    %572 = vmatpush.bf16.msra.mxu0 %v435
    %573 = vmatpush.bf16.msra.mxu0 %v434
    %574 = vmatpush.bf16.msra.mxu0 %v433
    %575 = vmatpush.bf16.msra.mxu0 %v432
    %576 = vmatpush.bf16.msra.mxu0 %v431
    %577 = vmatmul.bf16.gmra.mxu0 %v145
    %v578 = vpop.f32.mrf.mxu0
    %v579 = vadd.f32 %v566, %v578
    %v580 = vpop.f32.mrf.mxu0
    %581 = vdwg.mxu0
    %582 = vmatpush.bf16.msra.mxu0 %v446
    %583 = vmatpush.bf16.msra.mxu0 %v445
    %584 = vmatpush.bf16.msra.mxu0 %v444
    %585 = vmatpush.bf16.msra.mxu0 %v443
    %586 = vmatpush.bf16.msra.mxu0 %v442
    %587 = vmatpush.bf16.msra.mxu0 %v441
    %588 = vmatpush.bf16.msra.mxu0 %v440
    %589 = vmatpush.bf16.msra.mxu0 %v439
    %590 = vmatmul.bf16.gmra.mxu0 %v146
    %v591 = vpop.f32.mrf.mxu0
    %v592 = vadd.f32 %v579, %v591
    %v593 = vpop.f32.mrf.mxu0
    %594 = vdwg.mxu0
    %595 = vmatpush.bf16.msra.mxu0 %v454
    %596 = vmatpush.bf16.msra.mxu0 %v453
    %597 = vmatpush.bf16.msra.mxu0 %v452
    %598 = vmatpush.bf16.msra.mxu0 %v451
    %599 = vmatpush.bf16.msra.mxu0 %v450
    %600 = vmatpush.bf16.msra.mxu0 %v449
    %601 = vmatpush.bf16.msra.mxu0 %v448
    %602 = vmatpush.bf16.msra.mxu0 %v447
    %603 = vmatmul.bf16.gmra.mxu0 %v147
    %v604 = vpop.f32.mrf.mxu0
    %v605 = vadd.f32 %v592, %v604
    %v606 = vpop.f32.mrf.mxu0
    %607 = vdwg.mxu0
    %608 = vmatpush.bf16.msra.mxu0 %v462
    %609 = vmatpush.bf16.msra.mxu0 %v461
    %610 = vmatpush.bf16.msra.mxu0 %v460
    %611 = vmatpush.bf16.msra.mxu0 %v459
    %612 = vmatpush.bf16.msra.mxu0 %v458
    %613 = vmatpush.bf16.msra.mxu0 %v457
    %614 = vmatpush.bf16.msra.mxu0 %v456
    %615 = vmatpush.bf16.msra.mxu0 %v455
    %616 = vmatmul.bf16.gmra.mxu0 %v148
    %v617 = vpop.f32.mrf.mxu0
    %v618 = vadd.f32 %v605, %v617
    %v619 = vpop.f32.mrf.mxu0
    %620 = vdwg.mxu0
    %621 = vmatpush.bf16.msra.mxu0 %v470
    %622 = vmatpush.bf16.msra.mxu0 %v469
    %623 = vmatpush.bf16.msra.mxu0 %v468
    %624 = vmatpush.bf16.msra.mxu0 %v467
    %625 = vmatpush.bf16.msra.mxu0 %v466
    %626 = vmatpush.bf16.msra.mxu0 %v465
    %627 = vmatpush.bf16.msra.mxu0 %v464
    %628 = vmatpush.bf16.msra.mxu0 %v463
    %629 = vmatmul.bf16.gmra.mxu0 %v149
    %v630 = vpop.f32.mrf.mxu0
    %v631 = vadd.f32 %v618, %v630
    %v632 = vpop.f32.mrf.mxu0
    %633 = vdwg.mxu0
    %634 = vmatpush.bf16.msra.mxu0 %v478
    %635 = vmatpush.bf16.msra.mxu0 %v477
    %636 = vmatpush.bf16.msra.mxu0 %v476
    %637 = vmatpush.bf16.msra.mxu0 %v475
    %638 = vmatpush.bf16.msra.mxu0 %v474
    %639 = vmatpush.bf16.msra.mxu0 %v473
    %640 = vmatpush.bf16.msra.mxu0 %v472
    %641 = vmatpush.bf16.msra.mxu0 %v471
    %642 = vmatmul.bf16.gmra.mxu0 %v150
    %v643 = vpop.f32.mrf.mxu0
    %v644 = vadd.f32 %v631, %v643
    %v645 = vpop.f32.mrf.mxu0
    %646 = vdwg.mxu0
    %v647 = vpack.c.bf16 %v644, %v644
    %vm648 = vcmask 827392
    %vm649 = vsmask.f32 256
    %vm650 = vmand %vm648, %vm649
    %v651 = vld [vmem:[#allocation2] sm:$0x1]
    %v652 = vsel %vm650, %v647, %v651
    %653 = vst [vmem:[#allocation2] sm:$0x1] %v652
    // Predicated region
    $region10: #{_matmul_fused_jit.1} parent=1 // pred_check
      _
    $region11: #{_matmul_fused_jit.1} parent=1 // pred_check_branch
      %655 = sbr.rel (0) target = $region13
    $region12: #{_matmul_fused_jit.1} parent=1 // pred_region
      %657 = vsyncadd [#allocation3], 0
      %s659 = sshll.u32 [#allocation2], 4
      %s660 = int_to_ptr.vmem [resolvable:$true] %s659
      %s661 = sshll.u32 %s2, 4
      %s662 = int_to_ptr.hbm [resolvable:$true] %s661
      %664 = dma.vmem_to_hbm [thread:$0]  %s660, 16, %s662, [#allocation3]
    $region13: #{_matmul_fused_jit.1} parent=1 // pred_fallthru
      _
    // Predicated region
    $region14: #{_matmul_fused_jit.1} parent=1 // pred_check
      _
    $region15: #{_matmul_fused_jit.1} parent=1 // pred_check_branch
      %666 = sbr.rel (0) target = $region17
    $region16: #{_matmul_fused_jit.1} parent=1 // pred_region
      %668 = dma.done [#allocation3], 16
    $region17: #{_matmul_fused_jit.1} parent=1 // pred_fallthru
      _
    %669 = vsyncpa [#allocation3], 1

</llo_original>
